<compile_context>
chip_gen: v7x
topology: tpu7x:2x2x1
jax: 0.10.0
libtpu: 0.0.40
codegen_flags: <defaults>
</compile_context>

<pallas_src>
import jax
import jax.numpy as jnp
from jax.experimental import pallas as pl
from jax.experimental.pallas import tpu as pltpu


def _round_up(v, m):
    return ((v + m - 1) // m) * m


def _vmem_capacity_bytes():
    """Physical VMEM of the attached TPU; falls back to v7x's 64 MiB (smallest)."""
    try:
        cap = int(getattr(pltpu.get_tpu_info(), "vmem_capacity_bytes", 0))
        if cap > 0:
            return cap
    except Exception:
        pass
    return 64 * 1024 * 1024


def _choose_tiles(n, c_in, c_out, length, itemsize, tile_budget_bytes):
    """Pick (bn, tl) so the double-buffered x/out tiles fill ~tile_budget_bytes."""
    # Bytes per lane for one batch element of a double-buffered (x + out) tile,
    # accounting for sublane padding to 8 rows.
    per_lane = 2 * (_round_up(c_in, 8) + _round_up(c_out, 8)) * itemsize
    max_lanes = max(128, tile_budget_bytes // per_lane)
    if length <= max_lanes:
        # Whole L fits in one tile; spend leftover budget on batch blocking so a
        # short L still amortizes the per-grid-step overhead.
        tl = int(length)
        per_batch = per_lane * _round_up(length, 128)
        bn = int(max(1, min(n, tile_budget_bytes // max(per_batch, 1))))
    else:
        tl = int((max_lanes // 128) * 128)   # multiple of 128 -> lane-dense stores
        bn = 1
    return bn, tl


def _make_conv1x1_kernel(bn, c_in, use_mxu):
    def kernel(x_ref, w_ref, b_ref, o_ref):
        # x_ref: (bn, C_in, TL), w_ref: (C_out, C_in), b_ref: (C_out, 1),
        # o_ref: (bn, C_out, TL)
        w = w_ref[...]
        bias = b_ref[...].astype(jnp.float32)
        for b in range(bn):  # static, small unroll over the batch block
            xb = x_ref[b]                                   # (C_in, TL)
            if use_mxu:
                acc = jnp.dot(w, xb, preferred_element_type=jnp.float32)
            else:
                # Tiny channel count: unrolled VPU MAC, L stays on the lane axis.
                wf = w.astype(jnp.float32)
                xf = xb.astype(jnp.float32)
                acc = wf[:, 0:1] * xf[0:1, :]
                for c in range(1, c_in):
                    acc = acc + wf[:, c:c + 1] * xf[c:c + 1, :]
            o_ref[b] = (acc + bias).astype(o_ref.dtype)

    return kernel


def outconv_pallas(x, weight, bias, *, tile_budget_bytes=None):
    """1x1 Conv1d forward.

    x      : (N, C_in, L)
    weight : (C_out, C_in, 1)   (PyTorch Conv1d weight layout)
    bias   : (C_out,)
    returns: (N, C_out, L)
    """
    n, c_in, length = x.shape
    c_out = weight.shape[0]
    itemsize = jnp.dtype(x.dtype).itemsize

    w2d = weight[:, :, 0]                 # (C_out, C_in) -- no transpose needed
    b2d = bias.reshape(c_out, 1)          # broadcasts over the lane (L) axis

    vmem_cap = _vmem_capacity_bytes()
    if tile_budget_bytes is None:
        # ~cap/3 for tiles: ~21 MiB on v7x (64 MiB VMEM), 40 MiB on v5e/v6e.
        tile_budget_bytes = max(8 * 1024 * 1024,
                                min(vmem_cap // 3, 40 * 1024 * 1024))
    bn, tl = _choose_tiles(n, c_in, c_out, length, itemsize, tile_budget_bytes)

    # No pre-padding: Pallas clips the ragged boundary blocks (pointwise along L,
    # so garbage lanes in the boundary input block never reach valid outputs).
    grid = (pl.cdiv(n, bn), pl.cdiv(length, tl))

    use_mxu = (c_in > 4) or (x.dtype == jnp.bfloat16)
    kernel = _make_conv1x1_kernel(bn, c_in, use_mxu)

    cost = pl.CostEstimate(
        flops=2 * n * length * c_in * c_out,
        transcendentals=0,
        bytes_accessed=(n * c_in * length + c_out * c_in + c_out
                        + n * c_out * length) * itemsize,
    )

    # Tile footprint + headroom, capped at 3/4 of physical VMEM per generation.
    vmem_limit = int(min(vmem_cap * 3 // 4,
                         max(32 * 1024 * 1024,
                             tile_budget_bytes + 16 * 1024 * 1024)))

    return pl.pallas_call(
        kernel,
        out_shape=jax.ShapeDtypeStruct((n, c_out, length), x.dtype),
        grid_spec=pltpu.PrefetchScalarGridSpec(
            num_scalar_prefetch=0,
            grid=grid,
            in_specs=[
                # x tile: (bn, C_in, TL); L on the lane axis.
                pl.BlockSpec((bn, c_in, tl), lambda i, j: (i, 0, j)),
                # weight & bias: resident across the whole grid.
                pl.BlockSpec((c_out, c_in), lambda i, j: (0, 0)),
                pl.BlockSpec((c_out, 1), lambda i, j: (0, 0)),
            ],
            out_specs=pl.BlockSpec((bn, c_out, tl), lambda i, j: (i, 0, j)),
        ),
        compiler_params=pltpu.CompilerParams(
            # Independent output tiles on both axes -> megacore sharding on v7x.
            dimension_semantics=("parallel", "parallel"),
            vmem_limit_bytes=vmem_limit,
        ),
        cost_estimate=cost,
    )(x, w2d, b2d)


def init_outconv_params(key, in_ch, out_ch, dtype=jnp.float32):
    """Deterministic parameter init matching Conv1d(in_ch, out_ch, kernel_size=1)."""
    k_w, k_b = jax.random.split(key)
    bound = 1.0 / (in_ch ** 0.5)
    weight = jax.random.uniform(k_w, (out_ch, in_ch, 1), dtype, -bound, bound)
    bias = jax.random.uniform(k_b, (out_ch,), dtype, -bound, bound)
    return weight, bias


def _reference(x, weight, bias):
    return jnp.einsum("ncl,oc->nol", x, weight[:, :, 0]) + bias[None, :, None]


if __name__ == "__main__":
    key = jax.random.PRNGKey(0)
    k_x, k_p, k_x2, k_p2, k_x3, k_p3 = jax.random.split(key, 6)

    # 1) Small shapes (VPU path, batch-blocked single tile).
    batch, in_ch, out_ch, length = 2, 4, 8, 16
    x = jax.random.normal(k_x, (batch, in_ch, length), dtype=jnp.float32)
    weight, bias = init_outconv_params(k_p, in_ch, out_ch)
    out = jax.block_until_ready(outconv_pallas(x, weight, bias))
    assert out.shape == (batch, out_ch, length)
    assert jnp.allclose(out, _reference(x, weight, bias), atol=1e-5, rtol=1e-5)

    # 2) Larger channel count (MXU path).
    b2, ci2, co2, l2 = 2, 32, 8, 640
    x2 = jax.random.normal(k_x2, (b2, ci2, l2), dtype=jnp.float32)
    w2, bias2 = init_outconv_params(k_p2, ci2, co2)
    out2 = jax.block_until_ready(outconv_pallas(x2, w2, bias2))
    assert out2.shape == (b2, co2, l2)
    assert jnp.allclose(out2, _reference(x2, w2, bias2), atol=1e-4, rtol=1e-4)

    # 3) Ragged L with a tiny tile budget to force tiling + boundary-block clipping
    #    (exercises the no-pre-pad path; normal budgets would fit L in one tile).
    b3, ci3, co3, l3 = 2, 4, 8, 800
    x3 = jax.random.normal(k_x3, (b3, ci3, l3), dtype=jnp.float32)
    w3, bias3 = init_outconv_params(k_p3, ci3, co3)
    out3 = jax.block_until_ready(
        outconv_pallas(x3, w3, bias3, tile_budget_bytes=64 * 1024))
    assert out3.shape == (b3, co3, l3)
    assert jnp.allclose(out3, _reference(x3, w3, bias3), atol=1e-5, rtol=1e-5)

    print("KERNEL_OK")
</pallas_src>

<mosaic_0001>
module attributes {stable_mosaic.version = 11 : i64} {
  func.func @kernel(%arg0: i32, %arg1: i32, %arg2: memref<2x4x16xf32, #tpu.memory_space<vmem>>, %arg3: memref<8x4xf32, #tpu.memory_space<vmem>>, %arg4: memref<8x1xf32, #tpu.memory_space<vmem>>, %arg5: memref<2x8x16xf32, #tpu.memory_space<vmem>>) attributes {dimension_semantics = [#tpu.dimension_semantics<parallel>, #tpu.dimension_semantics<parallel>], iteration_bounds = array<i64: 1, 1>, scalar_prefetch = 0 : i64, scratch_operands = 0 : i64, tpu.core_type = #tpu.core_type<tc>, window_params = [{transform_indices = @transform_0, window_bounds = array<i64: 2, 4, 16>}, {pipeline_mode = #tpu.pipeline_mode<synchronous>, transform_indices = @transform_1, window_bounds = array<i64: 8, 4>}, {pipeline_mode = #tpu.pipeline_mode<synchronous>, transform_indices = @transform_2, window_bounds = array<i64: 8, 1>}, {transform_indices = @transform_3, window_bounds = array<i64: 2, 8, 16>}]} {
    %c0 = arith.constant 0 : index
    %c0_0 = arith.constant 0 : index
    %0 = vector.load %arg3[%c0, %c0_0] : memref<8x4xf32, #tpu.memory_space<vmem>>, vector<8x4xf32>
    %c0_1 = arith.constant 0 : index
    %c0_2 = arith.constant 0 : index
    %1 = vector.load %arg4[%c0_1, %c0_2] : memref<8x1xf32, #tpu.memory_space<vmem>>, vector<8x1xf32>
    %c0_3 = arith.constant 0 : index
    %c0_4 = arith.constant 0 : index
    %c0_5 = arith.constant 0 : index
    %2 = vector.load %arg2[%c0_3, %c0_4, %c0_5] : memref<2x4x16xf32, #tpu.memory_space<vmem>>, vector<1x4x16xf32>
    %3 = vector.shape_cast %2 : vector<1x4x16xf32> to vector<4x16xf32>
    %4 = vector.extract_strided_slice %0 {offsets = [0, 0], sizes = [8, 1], strides = [1, 1]} : vector<8x4xf32> to vector<8x1xf32>
    %5 = vector.extract_strided_slice %3 {offsets = [0, 0], sizes = [1, 16], strides = [1, 1]} : vector<4x16xf32> to vector<1x16xf32>
    %6 = vector.broadcast %4 : vector<8x1xf32> to vector<8x16xf32>
    %7 = vector.broadcast %5 : vector<1x16xf32> to vector<8x16xf32>
    %8 = arith.mulf %6, %7 : vector<8x16xf32>
    %9 = vector.extract_strided_slice %0 {offsets = [0, 1], sizes = [8, 1], strides = [1, 1]} : vector<8x4xf32> to vector<8x1xf32>
    %10 = vector.extract_strided_slice %3 {offsets = [1, 0], sizes = [1, 16], strides = [1, 1]} : vector<4x16xf32> to vector<1x16xf32>
    %11 = vector.broadcast %9 : vector<8x1xf32> to vector<8x16xf32>
    %12 = vector.broadcast %10 : vector<1x16xf32> to vector<8x16xf32>
    %13 = arith.mulf %11, %12 : vector<8x16xf32>
    %14 = arith.addf %8, %13 : vector<8x16xf32>
    %15 = vector.extract_strided_slice %0 {offsets = [0, 2], sizes = [8, 1], strides = [1, 1]} : vector<8x4xf32> to vector<8x1xf32>
    %16 = vector.extract_strided_slice %3 {offsets = [2, 0], sizes = [1, 16], strides = [1, 1]} : vector<4x16xf32> to vector<1x16xf32>
    %17 = vector.broadcast %15 : vector<8x1xf32> to vector<8x16xf32>
    %18 = vector.broadcast %16 : vector<1x16xf32> to vector<8x16xf32>
    %19 = arith.mulf %17, %18 : vector<8x16xf32>
    %20 = arith.addf %14, %19 : vector<8x16xf32>
    %21 = vector.extract_strided_slice %0 {offsets = [0, 3], sizes = [8, 1], strides = [1, 1]} : vector<8x4xf32> to vector<8x1xf32>
    %22 = vector.extract_strided_slice %3 {offsets = [3, 0], sizes = [1, 16], strides = [1, 1]} : vector<4x16xf32> to vector<1x16xf32>
    %23 = vector.broadcast %21 : vector<8x1xf32> to vector<8x16xf32>
    %24 = vector.broadcast %22 : vector<1x16xf32> to vector<8x16xf32>
    %25 = arith.mulf %23, %24 : vector<8x16xf32>
    %26 = arith.addf %20, %25 : vector<8x16xf32>
    %27 = vector.broadcast %1 : vector<8x1xf32> to vector<8x16xf32>
    %28 = arith.addf %26, %27 : vector<8x16xf32>
    %c0_6 = arith.constant 0 : index
    %c0_7 = arith.constant 0 : index
    %c0_8 = arith.constant 0 : index
    %29 = vector.load %arg5[%c0_6, %c0_7, %c0_8] : memref<2x8x16xf32, #tpu.memory_space<vmem>>, vector<1x8x16xf32>
    %30 = vector.shape_cast %29 : vector<1x8x16xf32> to vector<8x16xf32>
    %31 = vector.shape_cast %28 : vector<8x16xf32> to vector<1x8x16xf32>
    tpu.vector_store %arg5[%c0_6, %c0_7, %c0_8], %31 {strides = array<i32>} : memref<2x8x16xf32, #tpu.memory_space<vmem>>, vector<1x8x16xf32>,
    %c1 = arith.constant 1 : index
    %c0_9 = arith.constant 0 : index
    %c0_10 = arith.constant 0 : index
    %32 = vector.load %arg2[%c1, %c0_9, %c0_10] : memref<2x4x16xf32, #tpu.memory_space<vmem>>, vector<1x4x16xf32>
    %33 = vector.shape_cast %32 : vector<1x4x16xf32> to vector<4x16xf32>
    %34 = vector.extract_strided_slice %0 {offsets = [0, 0], sizes = [8, 1], strides = [1, 1]} : vector<8x4xf32> to vector<8x1xf32>
    %35 = vector.extract_strided_slice %33 {offsets = [0, 0], sizes = [1, 16], strides = [1, 1]} : vector<4x16xf32> to vector<1x16xf32>
    %36 = vector.broadcast %34 : vector<8x1xf32> to vector<8x16xf32>
    %37 = vector.broadcast %35 : vector<1x16xf32> to vector<8x16xf32>
    %38 = arith.mulf %36, %37 : vector<8x16xf32>
    %39 = vector.extract_strided_slice %0 {offsets = [0, 1], sizes = [8, 1], strides = [1, 1]} : vector<8x4xf32> to vector<8x1xf32>
    %40 = vector.extract_strided_slice %33 {offsets = [1, 0], sizes = [1, 16], strides = [1, 1]} : vector<4x16xf32> to vector<1x16xf32>
    %41 = vector.broadcast %39 : vector<8x1xf32> to vector<8x16xf32>
    %42 = vector.broadcast %40 : vector<1x16xf32> to vector<8x16xf32>
    %43 = arith.mulf %41, %42 : vector<8x16xf32>
    %44 = arith.addf %38, %43 : vector<8x16xf32>
    %45 = vector.extract_strided_slice %0 {offsets = [0, 2], sizes = [8, 1], strides = [1, 1]} : vector<8x4xf32> to vector<8x1xf32>
    %46 = vector.extract_strided_slice %33 {offsets = [2, 0], sizes = [1, 16], strides = [1, 1]} : vector<4x16xf32> to vector<1x16xf32>
    %47 = vector.broadcast %45 : vector<8x1xf32> to vector<8x16xf32>
    %48 = vector.broadcast %46 : vector<1x16xf32> to vector<8x16xf32>
    %49 = arith.mulf %47, %48 : vector<8x16xf32>
    %50 = arith.addf %44, %49 : vector<8x16xf32>
    %51 = vector.extract_strided_slice %0 {offsets = [0, 3], sizes = [8, 1], strides = [1, 1]} : vector<8x4xf32> to vector<8x1xf32>
    %52 = vector.extract_strided_slice %33 {offsets = [3, 0], sizes = [1, 16], strides = [1, 1]} : vector<4x16xf32> to vector<1x16xf32>
    %53 = vector.broadcast %51 : vector<8x1xf32> to vector<8x16xf32>
    %54 = vector.broadcast %52 : vector<1x16xf32> to vector<8x16xf32>
    %55 = arith.mulf %53, %54 : vector<8x16xf32>
    %56 = arith.addf %50, %55 : vector<8x16xf32>
    %57 = vector.broadcast %1 : vector<8x1xf32> to vector<8x16xf32>
    %58 = arith.addf %56, %57 : vector<8x16xf32>
    %c1_11 = arith.constant 1 : index
    %c0_12 = arith.constant 0 : index
    %c0_13 = arith.constant 0 : index
    %59 = vector.load %arg5[%c1_11, %c0_12, %c0_13] : memref<2x8x16xf32, #tpu.memory_space<vmem>>, vector<1x8x16xf32>
    %60 = vector.shape_cast %59 : vector<1x8x16xf32> to vector<8x16xf32>
    %61 = vector.shape_cast %58 : vector<8x16xf32> to vector<1x8x16xf32>
    tpu.vector_store %arg5[%c1_11, %c0_12, %c0_13], %61 {strides = array<i32>} : memref<2x8x16xf32, #tpu.memory_space<vmem>>, vector<1x8x16xf32>,
    return
  }
  func.func @transform_0(%arg0: i32, %arg1: i32) -> (i32, i32, i32) {
    %c0_i32 = arith.constant 0 : i32
    %c0_i32_0 = arith.constant 0 : i32
    return %arg0, %c0_i32, %arg1 : i32, i32, i32
  }
  func.func @transform_1(%arg0: i32, %arg1: i32) -> (i32, i32) {
    %c0_i32 = arith.constant 0 : i32
    %c0_i32_0 = arith.constant 0 : i32
    %c0_i32_1 = arith.constant 0 : i32
    return %c0_i32, %c0_i32_0 : i32, i32
  }
  func.func @transform_2(%arg0: i32, %arg1: i32) -> (i32, i32) {
    %c0_i32 = arith.constant 0 : i32
    %c0_i32_0 = arith.constant 0 : i32
    %c0_i32_1 = arith.constant 0 : i32
    return %c0_i32, %c0_i32_0 : i32, i32
  }
  func.func @transform_3(%arg0: i32, %arg1: i32) -> (i32, i32, i32) {
    %c0_i32 = arith.constant 0 : i32
    %c0_i32_0 = arith.constant 0 : i32
    return %arg0, %c0_i32, %arg1 : i32, i32, i32
  }
}

</mosaic_0001>

<llo_original>
// kernel: tpu_custom_call.1
$region0: #{tpu_custom_call.1}
  #allocation0 [shape = 'u32[]', space=smem, size = 0x4, offset = 0x4, fixed_abs, tag = 'smem constant byte address 0x4 - core index']
  #allocation1 [shape = 'u32[144,128]{1,0:T(1,128)}', space=vmem, size = 0x12000, scoped, tag = 'internal scratch']
  %s0 = inlined_call_operand.vmem [shape: f32[2,4,16], index: 0, kind: input, shape index: {}]
  %s1 = inlined_call_operand.vmem [shape: f32[8,4], index: 1, kind: input, shape index: {}]
  %s2 = inlined_call_operand.vmem [shape: f32[8,1], index: 2, kind: input, shape index: {}]
  %s3 = inlined_call_operand.hbm [shape: f32[2,8,16], index: 3, kind: output, shape index: {}]
  %s4 = sld [smem:[#allocation0]]
  $region22: #{tpu_custom_call.1} parent=0
    _
  %s6 = ssub.s32 1, %s4
  %s7 = scalar_select 0, %s6, %s4
  $region1: #{tpu_custom_call.1} parent=0
    #allocation2 [shape = 'u8[8192]{0}', space=vmem, size = 0x2000, scoped, tag = 'output window, operand 0, single buffered']
    #allocation3 [shape = 's32[1]{0}', space=sflag, size = 0x4, scoped, tag = 'scoped memory for tpu_custom_call.1']
    %8 = vsyncpa [#allocation3], 0
    // Predicated region
    $region2: #{tpu_custom_call.1} parent=1 // pred_check
      _
    $region3: #{tpu_custom_call.1} parent=1 // pred_check_branch
      %10 = sbr.rel (0) target = $region5
    $region4: #{tpu_custom_call.1} parent=1 // pred_region
      _
    $region5: #{tpu_custom_call.1} parent=1 // pred_fallthru
      _
    // Predicated region
    $region6: #{tpu_custom_call.1} parent=1 // pred_check
      _
    $region7: #{tpu_custom_call.1} parent=1 // pred_check_branch
      %12 = sbr.rel (0) target = $region9
    $region8: #{tpu_custom_call.1} parent=1 // pred_region
      _
    $region9: #{tpu_custom_call.1} parent=1 // pred_fallthru
      _
    // Predicated region
    $region10: #{tpu_custom_call.1} parent=1 // pred_check
      _
    $region11: #{tpu_custom_call.1} parent=1 // pred_check_branch
      %14 = sbr.rel (0) target = $region13
    $region12: #{tpu_custom_call.1} parent=1 // pred_region
      _
    $region13: #{tpu_custom_call.1} parent=1 // pred_fallthru
      _
    %v15 = vld [vmem:[%s1] sm:$0xff]
    %v16 = vld [vmem:[%s2] sm:$0xff]
    %v17 = vld [vmem:[%s0] sm:$0xf]
    %19 = vset.pattern.permute.xlu0 0
    %20 = vperm.xlu0 %19, %v15
    %v21 = vpop.permute.xlu0 %20
    %v23 = vlaneseq
    %v24 = vshrl.u32 %v23, 7
    %v25 = vsub.s32 0, %v24
    %v26 = vrot.slane %v17, %v25
    %v27 = vmul.f32 %v21, %v26
    %28 = vset.pattern.permute.xlu0 1
    %29 = vperm.xlu0 %28, %v15
    %v30 = vpop.permute.xlu0 %29
    %v32 = vlaneseq
    %v33 = vshrl.u32 %v32, 7
    %v34 = vsub.s32 1, %v33
    %v35 = vrot.slane %v17, %v34
    %v36 = vmul.f32 %v30, %v35
    %v37 = vadd.f32 %v27, %v36
    %38 = vset.pattern.permute.xlu0 2
    %39 = vperm.xlu0 %38, %v15
    %v40 = vpop.permute.xlu0 %39
    %v42 = vlaneseq
    %v43 = vshrl.u32 %v42, 7
    %v44 = vsub.s32 2, %v43
    %v45 = vrot.slane %v17, %v44
    %v46 = vmul.f32 %v40, %v45
    %v47 = vadd.f32 %v37, %v46
    %48 = vset.pattern.permute.xlu0 3
    %49 = vperm.xlu0 %48, %v15
    %v50 = vpop.permute.xlu0 %49
    %v52 = vlaneseq
    %v53 = vshrl.u32 %v52, 7
    %v54 = vsub.s32 3, %v53
    %v55 = vrot.slane %v17, %v54
    %v56 = vmul.f32 %v50, %v55
    %v57 = vadd.f32 %v47, %v56
    %59 = vset.pattern.permute.xlu0 0
    %60 = vperm.xlu0 %59, %v16
    %v61 = vpop.permute.xlu0 %60
    %v63 = vadd.f32 %v57, %v61
    %vm64 = vcmask 130048
    %65 = vst.msk [vmem:[#allocation2] sm:$0xff] %vm64, %v63
    %s66 = scalar_lea.vmem %s0, 4
    %v67 = vld [vmem:[%s66] sm:$0xf]
    %v68 = vlaneseq
    %v69 = vshrl.u32 %v68, 7
    %v70 = vsub.s32 0, %v69
    %v71 = vrot.slane %v67, %v70
    %v72 = vmul.f32 %v21, %v71
    %v73 = vlaneseq
    %v74 = vshrl.u32 %v73, 7
    %v75 = vsub.s32 1, %v74
    %v76 = vrot.slane %v67, %v75
    %v77 = vmul.f32 %v30, %v76
    %v78 = vadd.f32 %v72, %v77
    %v79 = vlaneseq
    %v80 = vshrl.u32 %v79, 7
    %v81 = vsub.s32 2, %v80
    %v82 = vrot.slane %v67, %v81
    %v83 = vmul.f32 %v40, %v82
    %v84 = vadd.f32 %v78, %v83
    %v85 = vlaneseq
    %v86 = vshrl.u32 %v85, 7
    %v87 = vsub.s32 3, %v86
    %v88 = vrot.slane %v67, %v87
    %v89 = vmul.f32 %v50, %v88
    %v90 = vadd.f32 %v84, %v89
    %v91 = vadd.f32 %v90, %v61
    %s92 = scalar_lea.vmem [#allocation2], 8
    %93 = vst.msk [vmem:[%s92] sm:$0xff] %vm64, %v91
    // Predicated region
    $region14: #{tpu_custom_call.1} parent=1 // pred_check
      _
    $region15: #{tpu_custom_call.1} parent=1 // pred_check_branch
      %95 = sbr.rel (0) target = $region17
    $region16: #{tpu_custom_call.1} parent=1 // pred_region
      %s97 = ssub.s32 256, 256
      %98 = vsyncadd [#allocation3], %s97
      %s99 = sshll.u32 [#allocation2], 4
      %s100 = int_to_ptr.vmem [resolvable:$true] %s99
      %105 = dma.vmem_to_hbm [thread:$0]  %s100, 256, %s3, [#allocation3], 128, 128, 8
    $region17: #{tpu_custom_call.1} parent=1 // pred_fallthru
      _
    // Predicated region
    $region18: #{tpu_custom_call.1} parent=1 // pred_check
      _
    $region19: #{tpu_custom_call.1} parent=1 // pred_check_branch
      %107 = sbr.rel (0) target = $region21
    $region20: #{tpu_custom_call.1} parent=1 // pred_region
      %108 = dma.done [#allocation3], 256
    $region21: #{tpu_custom_call.1} parent=1 // pred_fallthru
      _
    %109 = vsyncpa [#allocation3], 1

</llo_original>
